<compile_context>
chip_gen: v7x
topology: tpu7x:2x2x1
jax: 0.10.0
libtpu: 0.0.40
codegen_flags: <defaults>
</compile_context>

<pallas_src>
import functools

import jax
import jax.numpy as jnp
from jax import lax
from jax.experimental import pallas as pl
from jax.experimental.pallas import tpu as pltpu


# ---------------------------------------------------------------------------
# Chip-aware tuning knobs (safe defaults if detection fails).
# ---------------------------------------------------------------------------
def _tpu_flavor():
    try:
        kind = jax.devices()[0].device_kind.lower()
    except Exception:
        kind = ""
    is_v7 = ("v7" in kind) or ("7x" in kind)
    is_v6 = "v6" in kind
    is_v5 = "v5" in kind
    # bf16 VALU/EUP exists on v6e/v7x; keep f32 math elsewhere (incl. unknown).
    bf16_math_ok = is_v6 or is_v7
    # v7x has only 64 MiB physical VMEM -> keep the scoped limit at 32 MiB;
    # v5e/v6e have 128 MiB physical -> allow bigger slabs.
    if is_v5 or is_v6:
        vmem_limit = 64 * 1024 * 1024
    else:
        vmem_limit = 32 * 1024 * 1024
    return {"is_v7": is_v7, "bf16_math_ok": bf16_math_ok, "vmem_limit": vmem_limit}


def _cdiv(a, b):
    return (a + b - 1) // b


def _round_up(x, m):
    return _cdiv(x, m) * m


def _sublane_tile(itemsize):
    return {4: 8, 2: 16, 1: 32}.get(itemsize, 8)


def _plan_tiling(n, c, itemsize, vmem_limit):
    """Pick (tile_n, tiles_per_split, num_splits, n_pad) from a VMEM budget.

    Per-sample-column VMEM bytes (sublane padded):
      logits block : roundup(C, sublane_tile(dtype)) * itemsize
      targets row  : (1, TILE_N) int32 pads 1 -> 8 sublanes = 32 B
    Double-buffered inputs are kept at ~60% of the scoped-VMEM limit, leaving
    headroom for the resident outputs and internal scratch.
    """
    c_pad = _round_up(c, _sublane_tile(itemsize))
    bytes_per_col = c_pad * itemsize + 8 * 4
    usable = int(vmem_limit * 0.6)
    tile_n_max = max(128, (usable // (2 * bytes_per_col)) // 128 * 128)

    n128 = _round_up(max(n, 1), 128)
    # Two splits (one per v7x TensorCore) whenever there is >=2 lane-blocks of
    # work; the split stays at tile granularity so no core gets an empty tile.
    num_splits = 2 if n128 >= 256 else 1
    n_tiles = max(_cdiv(n128, tile_n_max), num_splits)
    n_tiles = _round_up(n_tiles, num_splits)
    tile_n = _round_up(_cdiv(n128, n_tiles), 128)
    tiles_per_split = n_tiles // num_splits
    n_pad = n_tiles * tile_n          # bounded pad: < one tile of waste total
    return tile_n, tiles_per_split, num_splits, n_pad


# ---------------------------------------------------------------------------
# Kernel: per-tile softmax + one-hot partial sums into resident f32 blocks.
# ---------------------------------------------------------------------------
def _dice_partials_kernel(x_ref, t_ref, inter_ref, union_ref, *,
                          n_valid, tile_n, tiles_per_split, c, compute_dtype):
    """x_ref: (C, TILE_N) logits; t_ref: (1, TILE_N) int32 targets.

    inter_ref / union_ref: (1, C, 1) f32 per-split accumulators (resident
    across the reduction grid axis).
    """
    split = pl.program_id(0)
    step = pl.program_id(1)

    @pl.when(step == 0)
    def _():
        inter_ref[...] = jnp.zeros_like(inter_ref)
        union_ref[...] = jnp.zeros_like(union_ref)

    # ---- softmax over the class (sublane) axis -----------------------------
    x = x_ref[...]                                            # (C, TILE_N)
    xc = x if x.dtype == compute_dtype else x.astype(compute_dtype)
    m = jnp.max(xc, axis=0, keepdims=True)                    # (1, TILE_N)
    e = jnp.exp(xc - m)                                       # (C, TILE_N)
    ef = e if e.dtype == jnp.float32 else e.astype(jnp.float32)
    denom = jnp.sum(ef, axis=0, keepdims=True)                # (1, TILE_N) f32
    probs = ef * pl.reciprocal(denom, approx=True)            # (C, TILE_N) f32

    tgt = t_ref[...]                                          # (1, TILE_N) i32
    class_ids = lax.broadcasted_iota(jnp.int32, (c, 1), 0)    # (C, 1)

    tile_start = (split * tiles_per_split + step) * tile_n
    is_full = tile_start + tile_n <= n_valid                  # traced scalar

    def _accumulate(probs_c, one_hot):
        # probs_c: (C, TILE_N) f32 ; one_hot: (C, TILE_N) bool
        inter_ref[0, :, :] += jnp.sum(
            jnp.where(one_hot, probs_c, 0.0), axis=1, keepdims=True)
        union_ref[0, :, :] += (
            jnp.sum(probs_c, axis=1, keepdims=True)
            + jnp.sum(one_hot.astype(jnp.float32), axis=1, keepdims=True))

    # Fast path: fully in-bounds tile, no validity mask at all.
    @pl.when(is_full)
    def _():
        _accumulate(probs, tgt == class_ids)

    # Slow path: only the tile containing the ragged tail pays for the mask.
    # (The wrapper zero-pads, so padded columns are finite pre-mask.)
    @pl.when(jnp.logical_not(is_full))
    def _():
        lane = lax.broadcasted_iota(jnp.int32, (1, tile_n), 1)
        valid = (tile_start + lane) < n_valid                 # (1, TILE_N) bool
        probs_m = jnp.where(valid, probs, 0.0)
        one_hot = jnp.logical_and(tgt == class_ids, valid)
        _accumulate(probs_m, one_hot)


# ---------------------------------------------------------------------------
# Wrapper: layout, tiling plan, pallas_call, O(C) dice epilogue.
# ---------------------------------------------------------------------------
@functools.partial(jax.jit, static_argnames=("smooth", "reduction"))
def dice_loss(inputs, targets, *, smooth=1.0, reduction="mean"):
    """inputs: (N, C) float logits (any float dtype); targets: (N,) int classes."""
    n, c = inputs.shape
    flavor = _tpu_flavor()
    tile_n, tiles_per_split, num_splits, n_pad = _plan_tiling(
        n, c, inputs.dtype.itemsize, flavor["vmem_limit"])

    compute_dtype = (jnp.bfloat16
                     if (inputs.dtype == jnp.bfloat16 and flavor["bf16_math_ok"])
                     else jnp.float32)

    # Lane-dense (C, N) layout: classes on sublanes, samples on lanes.  The
    # transpose and the (bounded, < one tile) zero-pad fuse into one copy.
    # TODO(synk): accept logits already laid out as (C, N) from the producer.
    logits_cn = jnp.pad(inputs.T, ((0, 0), (0, n_pad - n)))            # (C, n_pad)
    targets_row = jnp.pad(targets.astype(jnp.int32), (0, n_pad - n)
                          ).reshape(1, n_pad)                          # (1, n_pad)

    kernel = functools.partial(
        _dice_partials_kernel,
        n_valid=n, tile_n=tile_n, tiles_per_split=tiles_per_split, c=c,
        compute_dtype=compute_dtype)

    if num_splits >= 2 and flavor["is_v7"]:
        split_sem = pltpu.CORE_PARALLEL        # really shard across the 2 TCs
    else:
        split_sem = pltpu.PARALLEL             # harmless on single-TC chips

    inter_parts, union_parts = pl.pallas_call(
        kernel,
        out_shape=(jax.ShapeDtypeStruct((num_splits, c, 1), jnp.float32),
                   jax.ShapeDtypeStruct((num_splits, c, 1), jnp.float32)),
        grid_spec=pltpu.PrefetchScalarGridSpec(
            num_scalar_prefetch=0,
            grid=(num_splits, tiles_per_split),
            in_specs=[
                pl.BlockSpec((c, tile_n),
                             lambda s, t: (0, s * tiles_per_split + t)),
                pl.BlockSpec((1, tile_n),
                             lambda s, t: (0, s * tiles_per_split + t)),
            ],
            out_specs=[
                pl.BlockSpec((1, c, 1), lambda s, t: (s, 0, 0)),
                pl.BlockSpec((1, c, 1), lambda s, t: (s, 0, 0)),
            ],
        ),
        compiler_params=pltpu.CompilerParams(
            dimension_semantics=(split_sem, pltpu.ARBITRARY),
            vmem_limit_bytes=flavor["vmem_limit"],
        ),
    )(logits_cn, targets_row)

    # O(C) epilogue (dice + reduction) in plain JAX.
    intersection = jnp.sum(inter_parts, axis=0)[:, 0]    # (C,)
    union = jnp.sum(union_parts, axis=0)[:, 0]           # (C,)
    dice = (2.0 * intersection + smooth) / (union + smooth)
    loss = 1.0 - dice
    if reduction == "mean":
        return loss.mean()
    elif reduction == "sum":
        return loss.sum()
    return loss


def _reference_dice_loss(inputs, targets, *, smooth=1.0, reduction="mean"):
    probs = jax.nn.softmax(inputs.astype(jnp.float32), axis=1)
    one_hot = jax.nn.one_hot(targets, inputs.shape[1], dtype=jnp.float32)
    intersection = jnp.sum(probs * one_hot, axis=0)
    union = jnp.sum(probs, axis=0) + jnp.sum(one_hot, axis=0)
    dice = (2.0 * intersection + smooth) / (union + smooth)
    loss = 1.0 - dice
    if reduction == "mean":
        return loss.mean()
    elif reduction == "sum":
        return loss.sum()
    return loss


if __name__ == "__main__":
    key = jax.random.PRNGKey(0)
    k1, k2 = jax.random.split(key)

    N, C = 16, 8  # batch of 16 samples, 8 classes
    inputs = jax.random.normal(k1, (N, C), dtype=jnp.float32)
    targets = jax.random.randint(k2, (N,), 0, C, dtype=jnp.int32)

    loss = dice_loss(inputs, targets, smooth=1.0, reduction="mean")
    loss = jax.block_until_ready(loss)

    ref = _reference_dice_loss(inputs, targets, smooth=1.0, reduction="mean")
    # approx EUP reciprocal in the softmax denom -> allow ~1e-3 tolerance.
    assert jnp.allclose(loss, ref, atol=2e-3, rtol=2e-3), (loss, ref)

    print("KERNEL_OK")
</pallas_src>

<mosaic_0001>
module attributes {stable_mosaic.version = 11 : i64} {
  func.func @_dice_partials_kernel(%arg0: i32, %arg1: i32, %arg2: memref<8x128xf32, #tpu.memory_space<vmem>>, %arg3: memref<1x128xi32, #tpu.memory_space<vmem>>, %arg4: memref<1x8x1xf32, #tpu.memory_space<vmem>>, %arg5: memref<1x8x1xf32, #tpu.memory_space<vmem>>) attributes {dimension_semantics = [#tpu.dimension_semantics<parallel>, #tpu.dimension_semantics<arbitrary>], iteration_bounds = array<i64: 1, 1>, scalar_prefetch = 0 : i64, scratch_operands = 0 : i64, tpu.core_type = #tpu.core_type<tc>, window_params = [{transform_indices = @transform_0, window_bounds = array<i64: 8, 128>}, {transform_indices = @transform_1, window_bounds = array<i64: 1, 128>}, {transform_indices = @transform_2, window_bounds = array<i64: 1, 8, 1>}, {transform_indices = @transform_3, window_bounds = array<i64: 1, 8, 1>}]} {
    %c0_i32 = arith.constant 0 : i32
    %0 = arith.cmpi eq, %arg1, %c0_i32 : i32
    %1 = arith.extui %0 : i1 to i32
    %c0_i32_0 = arith.constant 0 : i32
    %2 = arith.cmpi ne, %1, %c0_i32_0 : i32
    scf.if %2 {
      %cst_8 = arith.constant 0.000000e+00 : f32
      %26 = vector.broadcast %cst_8 : f32 to vector<1x8x1xf32>
      %c0_9 = arith.constant 0 : index
      %c0_10 = arith.constant 0 : index
      %c0_11 = arith.constant 0 : index
      %27 = vector.load %arg4[%c0_9, %c0_10, %c0_11] : memref<1x8x1xf32, #tpu.memory_space<vmem>>, vector<1x8x1xf32>
      tpu.vector_store %arg4[%c0_9, %c0_10, %c0_11], %26 {strides = array<i32>} : memref<1x8x1xf32, #tpu.memory_space<vmem>>, vector<1x8x1xf32>,
      %cst_12 = arith.constant 0.000000e+00 : f32
      %28 = vector.broadcast %cst_12 : f32 to vector<1x8x1xf32>
      %c0_13 = arith.constant 0 : index
      %c0_14 = arith.constant 0 : index
      %c0_15 = arith.constant 0 : index
      %29 = vector.load %arg5[%c0_13, %c0_14, %c0_15] : memref<1x8x1xf32, #tpu.memory_space<vmem>>, vector<1x8x1xf32>
      tpu.vector_store %arg5[%c0_13, %c0_14, %c0_15], %28 {strides = array<i32>} : memref<1x8x1xf32, #tpu.memory_space<vmem>>, vector<1x8x1xf32>,
    } else {
    }
    %c0 = arith.constant 0 : index
    %c0_1 = arith.constant 0 : index
    %3 = vector.load %arg2[%c0, %c0_1] : memref<8x128xf32, #tpu.memory_space<vmem>>, vector<8x128xf32>
    %cst = arith.constant dense<0xFF800000> : vector<128xf32>
    %4 = vector.multi_reduction <maximumf>, %3, %cst [0] : vector<8x128xf32> to vector<128xf32>
    %5 = vector.shape_cast %4 : vector<128xf32> to vector<1x128xf32>
    %6 = vector.broadcast %5 : vector<1x128xf32> to vector<8x128xf32>
    %7 = arith.subf %3, %6 : vector<8x128xf32>
    %8 = math.exp %7 : vector<8x128xf32>
    %cst_2 = arith.constant dense<0.000000e+00> : vector<128xf32>
    %9 = vector.multi_reduction <add>, %8, %cst_2 [0] : vector<8x128xf32> to vector<128xf32>
    %10 = vector.shape_cast %9 : vector<128xf32> to vector<1x128xf32>
    %11 = tpu.reciprocal %10 {approx = true} : vector<1x128xf32> -> vector<1x128xf32>
    %12 = vector.broadcast %11 : vector<1x128xf32> to vector<8x128xf32>
    %13 = arith.mulf %8, %12 : vector<8x128xf32>
    %c0_3 = arith.constant 0 : index
    %c0_4 = arith.constant 0 : index
    %14 = vector.load %arg3[%c0_3, %c0_4] : memref<1x128xi32, #tpu.memory_space<vmem>>, vector<1x128xi32>
    %15 = tpu.iota {dimensions = array<i32: 0>} : vector<8x1xi32>
    %c1_i32 = arith.constant 1 : i32
    %16 = arith.muli %arg0, %c1_i32 : i32
    %17 = arith.addi %16, %arg1 : i32
    %c128_i32 = arith.constant 128 : i32
    %18 = arith.muli %17, %c128_i32 : i32
    %c128_i32_5 = arith.constant 128 : i32
    %19 = arith.addi %18, %c128_i32_5 : i32
    %c16_i32 = arith.constant 16 : i32
    %20 = arith.cmpi sle, %19, %c16_i32 : i32
    %21 = arith.extui %20 : i1 to i32
    %c0_i32_6 = arith.constant 0 : i32
    %22 = arith.cmpi ne, %21, %c0_i32_6 : i32
    scf.if %22 {
      %26 = vector.broadcast %14 : vector<1x128xi32> to vector<8x128xi32>
      %27 = vector.broadcast %15 : vector<8x1xi32> to vector<8x128xi32>
      %28 = arith.cmpi eq, %26, %27 : vector<8x128xi32>
      %c0_8 = arith.constant 0 : index
      %c0_9 = arith.constant 0 : index
      %c0_10 = arith.constant 0 : index
      %29 = vector.load %arg4[%c0_8, %c0_9, %c0_10] : memref<1x8x1xf32, #tpu.memory_space<vmem>>, vector<1x8x1xf32>
      %30 = vector.shape_cast %29 : vector<1x8x1xf32> to vector<8x1xf32>
      %cst_11 = arith.constant 0.000000e+00 : f32
      %31 = vector.broadcast %cst_11 : f32 to vector<8x128xf32>
      %32 = arith.select %28, %13, %31 : vector<8x128xi1>, vector<8x128xf32>
      %cst_12 = arith.constant dense<0.000000e+00> : vector<8xf32>
      %33 = vector.multi_reduction <add>, %32, %cst_12 [1] : vector<8x128xf32> to vector<8xf32>
      %34 = vector.shape_cast %33 : vector<8xf32> to vector<8x1xf32>
      %35 = arith.addf %30, %34 : vector<8x1xf32>
      %c0_13 = arith.constant 0 : index
      %c0_14 = arith.constant 0 : index
      %c0_15 = arith.constant 0 : index
      %36 = vector.load %arg4[%c0_13, %c0_14, %c0_15] : memref<1x8x1xf32, #tpu.memory_space<vmem>>, vector<1x8x1xf32>
      %37 = vector.shape_cast %36 : vector<1x8x1xf32> to vector<8x1xf32>
      %38 = vector.shape_cast %35 : vector<8x1xf32> to vector<1x8x1xf32>
      tpu.vector_store %arg4[%c0_13, %c0_14, %c0_15], %38 {strides = array<i32>} : memref<1x8x1xf32, #tpu.memory_space<vmem>>, vector<1x8x1xf32>,
      %c0_16 = arith.constant 0 : index
      %c0_17 = arith.constant 0 : index
      %c0_18 = arith.constant 0 : index
      %39 = vector.load %arg5[%c0_16, %c0_17, %c0_18] : memref<1x8x1xf32, #tpu.memory_space<vmem>>, vector<1x8x1xf32>
      %40 = vector.shape_cast %39 : vector<1x8x1xf32> to vector<8x1xf32>
      %cst_19 = arith.constant dense<0.000000e+00> : vector<8xf32>
      %41 = vector.multi_reduction <add>, %13, %cst_19 [1] : vector<8x128xf32> to vector<8xf32>
      %42 = vector.shape_cast %41 : vector<8xf32> to vector<8x1xf32>
      %43 = arith.extui %28 : vector<8x128xi1> to vector<8x128xi32>
      %44 = arith.sitofp %43 : vector<8x128xi32> to vector<8x128xf32>
      %cst_20 = arith.constant dense<0.000000e+00> : vector<8xf32>
      %45 = vector.multi_reduction <add>, %44, %cst_20 [1] : vector<8x128xf32> to vector<8xf32>
      %46 = vector.shape_cast %45 : vector<8xf32> to vector<8x1xf32>
      %47 = arith.addf %42, %46 : vector<8x1xf32>
      %48 = arith.addf %40, %47 : vector<8x1xf32>
      %c0_21 = arith.constant 0 : index
      %c0_22 = arith.constant 0 : index
      %c0_23 = arith.constant 0 : index
      %49 = vector.load %arg5[%c0_21, %c0_22, %c0_23] : memref<1x8x1xf32, #tpu.memory_space<vmem>>, vector<1x8x1xf32>
      %50 = vector.shape_cast %49 : vector<1x8x1xf32> to vector<8x1xf32>
      %51 = vector.shape_cast %48 : vector<8x1xf32> to vector<1x8x1xf32>
      tpu.vector_store %arg5[%c0_21, %c0_22, %c0_23], %51 {strides = array<i32>} : memref<1x8x1xf32, #tpu.memory_space<vmem>>, vector<1x8x1xf32>,
    } else {
    }
    %true = arith.constant true
    %23 = arith.xori %20, %true : i1
    %24 = arith.extui %23 : i1 to i32
    %c0_i32_7 = arith.constant 0 : i32
    %25 = arith.cmpi ne, %24, %c0_i32_7 : i32
    scf.if %25 {
      %26 = tpu.iota {dimensions = array<i32: 1>} : vector<1x128xi32>
      %27 = vector.broadcast %18 : i32 to vector<1x128xi32>
      %28 = arith.addi %27, %26 : vector<1x128xi32>
      %c16_i32_8 = arith.constant 16 : i32
      %29 = vector.broadcast %c16_i32_8 : i32 to vector<1x128xi32>
      %30 = arith.cmpi slt, %28, %29 : vector<1x128xi32>
      %cst_9 = arith.constant 0.000000e+00 : f32
      %31 = vector.shape_cast %30 : vector<1x128xi1> to vector<1x128xi1>
      %32 = vector.broadcast %31 : vector<1x128xi1> to vector<8x128xi1>
      %33 = vector.broadcast %cst_9 : f32 to vector<8x128xf32>
      %34 = arith.select %32, %13, %33 : vector<8x128xi1>, vector<8x128xf32>
      %35 = vector.broadcast %14 : vector<1x128xi32> to vector<8x128xi32>
      %36 = vector.broadcast %15 : vector<8x1xi32> to vector<8x128xi32>
      %37 = arith.cmpi eq, %35, %36 : vector<8x128xi32>
      %38 = vector.broadcast %30 : vector<1x128xi1> to vector<8x128xi1>
      %39 = arith.andi %37, %38 : vector<8x128xi1>
      %c0_10 = arith.constant 0 : index
      %c0_11 = arith.constant 0 : index
      %c0_12 = arith.constant 0 : index
      %40 = vector.load %arg4[%c0_10, %c0_11, %c0_12] : memref<1x8x1xf32, #tpu.memory_space<vmem>>, vector<1x8x1xf32>
      %41 = vector.shape_cast %40 : vector<1x8x1xf32> to vector<8x1xf32>
      %cst_13 = arith.constant 0.000000e+00 : f32
      %42 = vector.broadcast %cst_13 : f32 to vector<8x128xf32>
      %43 = arith.select %39, %34, %42 : vector<8x128xi1>, vector<8x128xf32>
      %cst_14 = arith.constant dense<0.000000e+00> : vector<8xf32>
      %44 = vector.multi_reduction <add>, %43, %cst_14 [1] : vector<8x128xf32> to vector<8xf32>
      %45 = vector.shape_cast %44 : vector<8xf32> to vector<8x1xf32>
      %46 = arith.addf %41, %45 : vector<8x1xf32>
      %c0_15 = arith.constant 0 : index
      %c0_16 = arith.constant 0 : index
      %c0_17 = arith.constant 0 : index
      %47 = vector.load %arg4[%c0_15, %c0_16, %c0_17] : memref<1x8x1xf32, #tpu.memory_space<vmem>>, vector<1x8x1xf32>
      %48 = vector.shape_cast %47 : vector<1x8x1xf32> to vector<8x1xf32>
      %49 = vector.shape_cast %46 : vector<8x1xf32> to vector<1x8x1xf32>
      tpu.vector_store %arg4[%c0_15, %c0_16, %c0_17], %49 {strides = array<i32>} : memref<1x8x1xf32, #tpu.memory_space<vmem>>, vector<1x8x1xf32>,
      %c0_18 = arith.constant 0 : index
      %c0_19 = arith.constant 0 : index
      %c0_20 = arith.constant 0 : index
      %50 = vector.load %arg5[%c0_18, %c0_19, %c0_20] : memref<1x8x1xf32, #tpu.memory_space<vmem>>, vector<1x8x1xf32>
      %51 = vector.shape_cast %50 : vector<1x8x1xf32> to vector<8x1xf32>
      %cst_21 = arith.constant dense<0.000000e+00> : vector<8xf32>
      %52 = vector.multi_reduction <add>, %34, %cst_21 [1] : vector<8x128xf32> to vector<8xf32>
      %53 = vector.shape_cast %52 : vector<8xf32> to vector<8x1xf32>
      %54 = arith.extui %39 : vector<8x128xi1> to vector<8x128xi32>
      %55 = arith.sitofp %54 : vector<8x128xi32> to vector<8x128xf32>
      %cst_22 = arith.constant dense<0.000000e+00> : vector<8xf32>
      %56 = vector.multi_reduction <add>, %55, %cst_22 [1] : vector<8x128xf32> to vector<8xf32>
      %57 = vector.shape_cast %56 : vector<8xf32> to vector<8x1xf32>
      %58 = arith.addf %53, %57 : vector<8x1xf32>
      %59 = arith.addf %51, %58 : vector<8x1xf32>
      %c0_23 = arith.constant 0 : index
      %c0_24 = arith.constant 0 : index
      %c0_25 = arith.constant 0 : index
      %60 = vector.load %arg5[%c0_23, %c0_24, %c0_25] : memref<1x8x1xf32, #tpu.memory_space<vmem>>, vector<1x8x1xf32>
      %61 = vector.shape_cast %60 : vector<1x8x1xf32> to vector<8x1xf32>
      %62 = vector.shape_cast %59 : vector<8x1xf32> to vector<1x8x1xf32>
      tpu.vector_store %arg5[%c0_23, %c0_24, %c0_25], %62 {strides = array<i32>} : memref<1x8x1xf32, #tpu.memory_space<vmem>>, vector<1x8x1xf32>,
    } else {
    }
    return
  }
  func.func @transform_0(%arg0: i32, %arg1: i32) -> (i32, i32) {
    %c1_i32 = arith.constant 1 : i32
    %0 = arith.muli %arg0, %c1_i32 : i32
    %1 = arith.addi %0, %arg1 : i32
    %c0_i32 = arith.constant 0 : i32
    %c0_i32_0 = arith.constant 0 : i32
    return %c0_i32, %1 : i32, i32
  }
  func.func @transform_1(%arg0: i32, %arg1: i32) -> (i32, i32) {
    %c1_i32 = arith.constant 1 : i32
    %0 = arith.muli %arg0, %c1_i32 : i32
    %1 = arith.addi %0, %arg1 : i32
    %c0_i32 = arith.constant 0 : i32
    %c0_i32_0 = arith.constant 0 : i32
    return %c0_i32, %1 : i32, i32
  }
  func.func @transform_2(%arg0: i32, %arg1: i32) -> (i32, i32, i32) {
    %c0_i32 = arith.constant 0 : i32
    %c0_i32_0 = arith.constant 0 : i32
    %c0_i32_1 = arith.constant 0 : i32
    return %arg0, %c0_i32, %c0_i32_0 : i32, i32, i32
  }
  func.func @transform_3(%arg0: i32, %arg1: i32) -> (i32, i32, i32) {
    %c0_i32 = arith.constant 0 : i32
    %c0_i32_0 = arith.constant 0 : i32
    %c0_i32_1 = arith.constant 0 : i32
    return %arg0, %c0_i32, %c0_i32_0 : i32, i32, i32
  }
}

</mosaic_0001>

<llo_original>
// kernel: dice_loss.1
$region0: #{dice_loss.1}
  #allocation0 [shape = 'u32[]', space=smem, size = 0x4, offset = 0x4, fixed_abs, tag = 'smem constant byte address 0x4 - core index']
  #allocation1 [shape = 'u32[144,128]{1,0:T(1,128)}', space=vmem, size = 0x12000, scoped, tag = 'internal scratch']
  %s0 = inlined_call_operand.vmem [shape: f32[8,128], index: 0, kind: input, shape index: {}]
  %s1 = inlined_call_operand.vmem [shape: s32[1,128], index: 1, kind: input, shape index: {}]
  %s2 = inlined_call_operand.vmem [shape: f32[1,8,1], index: 2, kind: output, shape index: {0}]
  %s3 = inlined_call_operand.vmem [shape: f32[1,8,1], index: 3, kind: output, shape index: {1}]
  %4 = xla_tuple %s2, %s3
  %s5 = sld [smem:[#allocation0]]
  $region38: #{dice_loss.1} parent=0
    _
  %s7 = ssub.s32 1, %s5
  %s8 = scalar_select 0, %s7, %s5
  // Predicated region
  $region2: #{dice_loss.1} parent=0 // pred_check
    _
  $region3: #{dice_loss.1} parent=0 // pred_check_branch
    %10 = sbr.rel (0) target = $region5
  $region4: #{dice_loss.1} parent=0 // pred_region
    %s11 = sadd.s32 0, 0
    %p12 = scmp.lt.s32.totalorder %s11, 0
    %s13 = scalar_select %p12, %s11, 0
    %s14 = smul.addr %s13, 8
    %s15 = scalar_lea.vmem %s0, %s14
    %s16 = sadd.s32 0, 0
  $region5: #{dice_loss.1} parent=0 // pred_fallthru
    _
  // Predicated region
  $region6: #{dice_loss.1} parent=0 // pred_check
    _
  $region7: #{dice_loss.1} parent=0 // pred_check_branch
    %18 = sbr.rel (0) target = $region9
  $region8: #{dice_loss.1} parent=0 // pred_region
    %s19 = sadd.s32 0, 0
    %p20 = scmp.lt.s32.totalorder %s19, 0
    %s21 = scalar_select %p20, %s19, 0
    %s22 = scalar_lea.vmem %s1, %s21
    %s23 = sadd.s32 0, 0
  $region9: #{dice_loss.1} parent=0 // pred_fallthru
    _
  %s24 = sadd.s32 0, 0
  %p25 = scmp.lt.s32.totalorder %s24, 0
  %s26 = scalar_select %p25, %s24, 0
  %s27 = smul.addr %s26, 8
  %s28 = scalar_lea.vmem %s0, %s27
  %s29 = sadd.s32 0, 0
  %p30 = scmp.lt.s32.totalorder %s29, 0
  %s31 = scalar_select %p30, %s29, 0
  %s32 = scalar_lea.vmem %s1, %s31
  %s33 = sadd.s32 0, 0
  %p34 = scmp.lt.s32.totalorder %s33, 0
  %s35 = scalar_select %p34, %s33, 0
  %s36 = smul.addr %s35, 8
  %s37 = scalar_lea.vmem %s0, %s36
  %s38 = sadd.s32 0, 0
  %s39 = sadd.s32 0, 0
  %p40 = scmp.lt.s32.totalorder %s39, 0
  %s41 = scalar_select %p40, %s39, 0
  %s42 = scalar_lea.vmem %s1, %s41
  %s43 = sadd.s32 0, 0
  %p44 = scmp.eq.s32.totalorder 0, 0
  // Predicated region
  $region10: #{dice_loss.1} parent=0 // pred_check
    %p45 = pneg %p44
  $region11: #{dice_loss.1} parent=0 // pred_check_branch
    %47 = sbr.rel (%p45) target = $region13
  $region12: #{dice_loss.1} parent=0 // pred_region
    %vm48 = vcmask 7168
    %49 = vst.msk [vmem:[%s2] sm:$0xff] %vm48, 0.0
    %50 = vst.msk [vmem:[%s3] sm:$0xff] %vm48, 0.0
  $region13: #{dice_loss.1} parent=0 // pred_fallthru
    _
  %v51 = vld [vmem:[%s37] sm:$0xff]
  %v52 = vrot.slane %v51, 4
  %v53 = vmax.f32 %v51, %v52
  %v54 = vrot.slane %v53, 2
  %v55 = vmax.f32 %v53, %v54
  %v56 = vrot.slane %v55, 1
  %v57 = vmax.f32 %v55, %v56
  %v58 = vsub.f32 %v51, %v57
  %v59 = vmul.f32 %v58, 1.442695
  %v60 = vpow.pop %v59
  %v61 = vrot.slane %v60, 4
  %v62 = vadd.f32 %v60, %v61
  %v63 = vrot.slane %v62, 2
  %v64 = vadd.f32 %v62, %v63
  %v65 = vrot.slane %v64, 1
  %v66 = vadd.f32 %v64, %v65
  %v67 = vrcp.pop %v66
  %v68 = vmul.f32 %v60, %v67
  %v69 = vld [vmem:[%s42] sm:$0x1]
  %v70 = vlaneseq
  %v71 = vshrl.u32 %v70, 7
  %s72 = sadd.s32 0, 0
  %s73 = smul.u32 %s72, 128
  %s74 = sadd.s32 %s73, 128
  %p75 = scmp.le.s32.totalorder %s74, 16
  // Predicated region
  $region14: #{dice_loss.1} parent=0 // pred_check
    %p76 = pneg %p75
  $region15: #{dice_loss.1} parent=0 // pred_check_branch
    %78 = sbr.rel (%p76) target = $region17
  $region16: #{dice_loss.1} parent=0 // pred_region
    %v79 = vlaneseq
    %v80 = vshrl.u32 %v79, 7
    %v81 = vsub.s32 0, %v80
    %v82 = vrot.slane %v69, %v81
    %vm83 = vcmp.eq.s32.totalorder %v82, %v71
    %v84 = vld [vmem:[%s2] sm:$0xff]
    %v85 = vsel %vm83, %v68, 0.0
    %86 = vadd.xlane.f32.xlu0 %v85
    %v87 = vpop.xlane.xlu0 %86
    %v88 = vadd.f32 %v84, %v87
    %vm89 = vcmask 7168
    %90 = vst.msk [vmem:[%s2] sm:$0xff] %vm89, %v88
    %v91 = vld [vmem:[%s3] sm:$0xff]
    %92 = vadd.xlane.f32.xlu0 %v68
    %v93 = vpop.xlane.xlu0 %92
    %v94 = vsel %vm83, 1, 0
    %v95 = vcvt.s32.f32 %v94
    %96 = vadd.xlane.f32.xlu0 %v95
    %v97 = vpop.xlane.xlu0 %96
    %v98 = vadd.f32 %v93, %v97
    %v99 = vadd.f32 %v91, %v98
    %100 = vst.msk [vmem:[%s3] sm:$0xff] %vm89, %v99
  $region17: #{dice_loss.1} parent=0 // pred_fallthru
    _
  %p101 = scmp.gt.s32.totalorder %s74, 16
  // Predicated region
  $region18: #{dice_loss.1} parent=0 // pred_check
    %p102 = pneg %p101
  $region19: #{dice_loss.1} parent=0 // pred_check_branch
    %104 = sbr.rel (%p102) target = $region21
  $region20: #{dice_loss.1} parent=0 // pred_region
    %v105 = vlaneseq
    %v106 = vand.u32 %v105, 127
    %v107 = vstv %s73
    %v108 = vadd.s32 %v107, %v106
    %vm109 = vcmp.lt.s32.totalorder %v108, 16
    %v110 = vsel %vm109, 1, 0
    %vm111 = vcmp.eq.s32.totalorder %v110, 1
    %v112 = vsel %vm111, %v68, 0.0
    %v113 = vlaneseq
    %v114 = vshrl.u32 %v113, 7
    %v115 = vsub.s32 0, %v114
    %v116 = vrot.slane %v69, %v115
    %vm117 = vcmp.eq.s32.totalorder %v116, %v71
    %vm118 = vmand %vm117, %vm111
    %v119 = vld [vmem:[%s2] sm:$0xff]
    %v120 = vsel %vm118, %v112, 0.0
    %121 = vadd.xlane.f32.xlu0 %v120
    %v122 = vpop.xlane.xlu0 %121
    %v123 = vadd.f32 %v119, %v122
    %vm124 = vcmask 7168
    %125 = vst.msk [vmem:[%s2] sm:$0xff] %vm124, %v123
    %v126 = vld [vmem:[%s3] sm:$0xff]
    %127 = vadd.xlane.f32.xlu0 %v112
    %v128 = vpop.xlane.xlu0 %127
    %v129 = vsel %vm118, 1, 0
    %v130 = vcvt.s32.f32 %v129
    %131 = vadd.xlane.f32.xlu0 %v130
    %v132 = vpop.xlane.xlu0 %131
    %v133 = vadd.f32 %v128, %v132
    %v134 = vadd.f32 %v126, %v133
    %135 = vst.msk [vmem:[%s3] sm:$0xff] %vm124, %v134
  $region21: #{dice_loss.1} parent=0 // pred_fallthru
    _
  // Predicated region
  $region22: #{dice_loss.1} parent=0 // pred_check
    _
  $region23: #{dice_loss.1} parent=0 // pred_check_branch
    %137 = sbr.rel (0) target = $region25
  $region24: #{dice_loss.1} parent=0 // pred_region
    _
  $region25: #{dice_loss.1} parent=0 // pred_fallthru
    _
  // Predicated region
  $region26: #{dice_loss.1} parent=0 // pred_check
    _
  $region27: #{dice_loss.1} parent=0 // pred_check_branch
    %139 = sbr.rel (0) target = $region29
  $region28: #{dice_loss.1} parent=0 // pred_region
    _
  $region29: #{dice_loss.1} parent=0 // pred_fallthru
    _
  // Predicated region
  $region30: #{dice_loss.1} parent=0 // pred_check
    _
  $region31: #{dice_loss.1} parent=0 // pred_check_branch
    %141 = sbr.rel (0) target = $region33
  $region32: #{dice_loss.1} parent=0 // pred_region
    _
  $region33: #{dice_loss.1} parent=0 // pred_fallthru
    _
  // Predicated region
  $region34: #{dice_loss.1} parent=0 // pred_check
    _
  $region35: #{dice_loss.1} parent=0 // pred_check_branch
    %143 = sbr.rel (0) target = $region37
  $region36: #{dice_loss.1} parent=0 // pred_region
    _
  $region37: #{dice_loss.1} parent=0 // pred_fallthru
    _

</llo_original>
